<compile_context>
chip_gen: v6e
topology: v6e:2x2x1
jax: 0.10.0
libtpu: 0.0.40
codegen_flags: <defaults>
</compile_context>

<pallas_src>
import functools

import jax
import jax.numpy as jnp
from jax.experimental import pallas as pl
from jax.experimental.pallas import tpu as pltpu

_LANE = 128
_SUBLANE = 8
_EPS = 1e-5
# Per-step working-set budget: conservative for v7x (64 MiB physical VMEM, 32 MiB scoped
# default) with double-buffered activation blocks; v5e/v6e (128 MiB) have extra headroom.
_VMEM_BUDGET = 24 * 1024 * 1024
_VMEM_LIMIT = 48 * 1024 * 1024
_TARGET_ROWS = 4096  # matmul M rows per grid step (amortize ~0.35us/step overhead)


def _round_up(v, m):
    return (v + m - 1) // m * m


def _convblock_kernel(x_ref, w1_ref, b1_ref, wcat_ref, b2_ref, out_ref, *, seq_len):
    """Fused ConvBlock for a block of `bb` batch elements.

    x_ref    : (bb, Lp, Cin_p)             f32 input (channels padded to 128 lanes,
                                           L padded to a multiple of 8 sublanes)
    w1_ref   : (3*Cin_p, Cout_p)           bf16 im2col conv1 weights, BN1 scale folded
    b1_ref   : (1, Cout_p)                 f32 BN1 bias
    wcat_ref : (3*Cout_p + Cin_p, Cout_p)  bf16 [conv2 im2col ; 1x1 skip] weights,
                                           BN2 / BN_skip scales folded
    b2_ref   : (1, Cout_p)                 f32 BN2 bias + BN_skip bias (combined)
    out_ref  : (bb, Lp, Cout_p)            f32 output
    """
    bb, l_pad, cin = x_ref.shape
    cout = out_ref.shape[2]
    m = bb * l_pad

    # Flatten batch into the matmul M dimension (free view: l_pad % 8 == 0).
    x = x_ref[...].reshape(m, cin)

    # Row-position masks, computed ONCE and reused by both convs (lane-broadcast).
    # They zero the k=3 halo taps at real sequence edges so nothing reads across the
    # batch seam or outside the implicit pad=1.  Rows at pos >= seq_len are wrapper
    # L-padding; their outputs are garbage but never feed a kept row and are sliced
    # off in the wrapper.
    pos = jax.lax.broadcasted_iota(jnp.int32, (bb, l_pad, 1), 1).reshape(m, 1)
    first = pos == 0
    last = pos == seq_len - 1

    # ---- conv1 (k=3, pad=1) as one im2col matmul (bf16 operands, f32 accum) -------
    x_bf = x.astype(jnp.bfloat16)
    x_m1 = jnp.where(first, 0.0, pltpu.roll(x, shift=1, axis=0)).astype(jnp.bfloat16)
    x_p1 = jnp.where(last, 0.0, pltpu.roll(x, shift=m - 1, axis=0)).astype(jnp.bfloat16)
    lhs1 = jnp.concatenate([x_m1, x_bf, x_p1], axis=1)                  # (m, 3*cin)
    h = jnp.maximum(
        jnp.dot(lhs1, w1_ref[...], preferred_element_type=jnp.float32) + b1_ref[...],
        0.0)                                                            # (m, cout) f32

    # ---- conv2 (k=3, pad=1) + 1x1 skip + residual add: a single fused matmul ------
    h_m1 = jnp.where(first, 0.0, pltpu.roll(h, shift=1, axis=0)).astype(jnp.bfloat16)
    h_p1 = jnp.where(last, 0.0, pltpu.roll(h, shift=m - 1, axis=0)).astype(jnp.bfloat16)
    lhs2 = jnp.concatenate([h_m1, h.astype(jnp.bfloat16), h_p1, x_bf], axis=1)
    out = jnp.maximum(
        jnp.dot(lhs2, wcat_ref[...], preferred_element_type=jnp.float32) + b2_ref[...],
        0.0)                                                            # (m, cout)
    out_ref[...] = out.reshape(bb, l_pad, cout).astype(out_ref.dtype)


def _pick_bb(n, l_pad, cin_p, cout_p):
    """Largest batch divisor whose bb*l_pad rows fit the VMEM budget and row target,
    keeping >= 2 grid steps when possible (v7x has 2 TensorCores)."""
    per_row = (2 * 4 * cin_p      # input block, f32, double-buffered by the pipeline
               + 2 * 4 * cout_p   # output block, f32, double-buffered
               + 2 * 3 * cin_p    # lhs1 (bf16)
               + 2 * cin_p        # x bf16 copy (fused skip tap)
               + 4 * cout_p       # h (f32)
               + 2 * 3 * cout_p   # h taps in lhs2 (bf16)
               + 4 * cout_p)      # fused matmul result (f32)
    weights = 2 * (3 * cin_p + 3 * cout_p + cin_p) * cout_p + 2 * 4 * cout_p
    bb = 1
    for d in range(2, n + 1):
        if n % d:
            continue
        if n >= 2 and n // d < 2:
            continue  # keep both v7x TensorCores busy under dimension_semantics=("parallel",)
        rows = d * l_pad
        if rows > _TARGET_ROWS:
            continue
        if rows * per_row + weights > _VMEM_BUDGET:
            continue
        bb = d
    return bb


def convblock_pallas(x_ncl, w1, bn1, w2, bn2, wsk, bnsk, *, eps=_EPS):
    """ConvBlock forward (eval-mode BatchNorm).

    x_ncl: (N, C_in, L) f32.  w1: (3, C_in, C_out), w2: (3, C_out, C_out),
    wsk: (C_in, C_out) in (tap, in, out) layout (wsk=None -> identity skip).
    bn* = (gamma, beta, mean, var).  Returns (N, C_out, L) f32.
    """
    n, c_in, length = x_ncl.shape
    c_out = w1.shape[2]
    cin_p = _round_up(c_in, _LANE)
    cout_p = _round_up(c_out, _LANE)
    l_pad = _round_up(length, _SUBLANE)

    def fold(bn):
        gamma, beta, mean, var = bn
        scale = gamma / jnp.sqrt(var + eps)
        return scale, beta - mean * scale

    s1, b1 = fold(bn1)
    s2, b2 = fold(bn2)
    if wsk is None:
        # Identity skip path (in_channels == out_channels, stride == 1 in the module).
        assert c_in == c_out, "identity skip requires in_channels == out_channels"
        wsk = jnp.eye(c_in, dtype=jnp.float32)
        ssk = jnp.ones((c_out,), jnp.float32)
        bsk = jnp.zeros((c_out,), jnp.float32)
    else:
        ssk, bsk = fold(bnsk)

    # Fold BN scales into the conv weights, zero-pad channels to the 128-lane boundary
    # (no-op for production channel counts), pre-concatenate the 3 taps (im2col), and
    # append the 1x1 skip weights so conv2 + skip + residual is one MXU matmul.
    # Weights are cast to bf16 (the kernel accumulates in f32).
    w1p = (jnp.zeros((3, cin_p, cout_p), jnp.float32)
           .at[:, :c_in, :c_out].set(w1 * s1[None, None, :])
           .reshape(3 * cin_p, cout_p))
    w2p = (jnp.zeros((3, cout_p, cout_p), jnp.float32)
           .at[:, :c_out, :c_out].set(w2 * s2[None, None, :])
           .reshape(3 * cout_p, cout_p))
    wskp = (jnp.zeros((cin_p, cout_p), jnp.float32)
            .at[:c_in, :c_out].set(wsk * ssk[None, :]))
    w1b = w1p.astype(jnp.bfloat16)
    wcat = jnp.concatenate([w2p, wskp], axis=0).astype(jnp.bfloat16)
    b1p = jnp.zeros((1, cout_p), jnp.float32).at[:, :c_out].set(b1[None, :])
    b2p = jnp.zeros((1, cout_p), jnp.float32).at[:, :c_out].set((b2 + bsk)[None, :])

    # NCL -> NLC so channels sit on the 128 lanes; pad channels and L.
    # TODO(synk): kept only because the PyTorch module contract is NCL; an all-NLC
    # pipeline would drop both wrapper transposes (each is an extra HBM pass).
    x_nlc = jnp.transpose(x_ncl, (0, 2, 1))
    if cin_p != c_in or l_pad != length:
        x_nlc = jnp.pad(x_nlc, ((0, 0), (0, l_pad - length), (0, cin_p - c_in)))

    bb = _pick_bb(n, l_pad, cin_p, cout_p)
    # TODO(synk): for very long sequences (bb=1 still over budget), additionally tile L
    # with a 1-row halo as a second "parallel" grid axis.

    def bcast(shape):
        # Grid-invariant weights/biases: constant index_map + single buffer
        # (double-buffering a constant block only wastes VMEM the activation tile needs).
        return pl.BlockSpec(shape, lambda i: (0,) * len(shape),
                            pipeline_mode=pl.Buffered(1))

    kernel = functools.partial(_convblock_kernel, seq_len=length)

    out = pl.pallas_call(
        kernel,
        out_shape=jax.ShapeDtypeStruct((n, l_pad, cout_p), jnp.float32),
        grid_spec=pltpu.PrefetchScalarGridSpec(
            num_scalar_prefetch=0,
            grid=(n // bb,),
            in_specs=[
                pl.BlockSpec((bb, l_pad, cin_p), lambda i: (i, 0, 0)),
                bcast((3 * cin_p, cout_p)),
                bcast((1, cout_p)),
                bcast((3 * cout_p + cin_p, cout_p)),
                bcast((1, cout_p)),
            ],
            out_specs=pl.BlockSpec((bb, l_pad, cout_p), lambda i: (i, 0, 0)),
        ),
        compiler_params=pltpu.CompilerParams(
            dimension_semantics=("parallel",),
            vmem_limit_bytes=_VMEM_LIMIT),
    )(x_nlc, w1b, b1p, wcat, b2p)

    # Drop L / channel padding, back to NCL.
    return jnp.transpose(out[:, :length, :c_out], (0, 2, 1))


# ----------------------------- reference (plain JAX) -----------------------------

def _conv1d_ref(x_ncl, w_oik, padding):
    return jax.lax.conv_general_dilated(
        x_ncl, w_oik, window_strides=(1,), padding=[(padding, padding)],
        dimension_numbers=("NCH", "OIH", "NCH"))


def _bn_ref(x_ncl, bn, eps=_EPS):
    gamma, beta, mean, var = bn
    inv = gamma / jnp.sqrt(var + eps)
    return (x_ncl - mean[None, :, None]) * inv[None, :, None] + beta[None, :, None]


def convblock_ref(x_ncl, w1, bn1, w2, bn2, wsk, bnsk):
    h = jax.nn.relu(_bn_ref(_conv1d_ref(x_ncl, jnp.transpose(w1, (2, 1, 0)), 1), bn1))
    y = _bn_ref(_conv1d_ref(h, jnp.transpose(w2, (2, 1, 0)), 1), bn2)
    ident = _bn_ref(_conv1d_ref(x_ncl, jnp.transpose(wsk[None], (2, 1, 0)), 0), bnsk)
    return jax.nn.relu(y + ident)


# --------------------------------------- main ---------------------------------------

if __name__ == "__main__":
    N, C_IN, C_OUT, L = 2, 4, 8, 16   # in_channels != out_channels -> skip path active

    key = jax.random.PRNGKey(0)
    ks = jax.random.split(key, 10)

    x = jax.random.normal(ks[0], (N, C_IN, L), jnp.float32)

    # Conv weights in (tap, in, out) layout.
    w1 = 0.2 * jax.random.normal(ks[1], (3, C_IN, C_OUT), jnp.float32)
    w2 = 0.2 * jax.random.normal(ks[2], (3, C_OUT, C_OUT), jnp.float32)
    wsk = 0.2 * jax.random.normal(ks[3], (C_IN, C_OUT), jnp.float32)

    # Deterministic, non-trivial BatchNorm parameters (eval mode).
    def bn_params(k):
        k1, k2, k3, k4 = jax.random.split(k, 4)
        gamma = 1.0 + 0.1 * jax.random.normal(k1, (C_OUT,), jnp.float32)
        beta = 0.1 * jax.random.normal(k2, (C_OUT,), jnp.float32)
        mean = 0.1 * jax.random.normal(k3, (C_OUT,), jnp.float32)
        var = 1.0 + 0.1 * jax.random.uniform(k4, (C_OUT,), jnp.float32)
        return gamma, beta, mean, var

    bn1 = bn_params(ks[4])
    bn2 = bn_params(ks[5])
    bnsk = bn_params(ks[6])

    out = convblock_pallas(x, w1, bn1, w2, bn2, wsk, bnsk)
    out = jax.block_until_ready(out)

    ref = jax.block_until_ready(convblock_ref(x, w1, bn1, w2, bn2, wsk, bnsk))

    assert out.shape == (N, C_OUT, L), out.shape
    # bf16 matmul operands (f32 accumulation) -> relaxed tolerance vs the f32 reference.
    assert jnp.allclose(out, ref, atol=5e-2, rtol=5e-2), \
        float(jnp.max(jnp.abs(out - ref)))

    print("KERNEL_OK")
</pallas_src>

<mosaic_0001>
module attributes {stable_mosaic.version = 11 : i64} {
  func.func @_convblock_kernel(%arg0: i32, %arg1: memref<1x16x128xf32, #tpu.memory_space<vmem>>, %arg2: memref<384x128xbf16, #tpu.memory_space<vmem>>, %arg3: memref<1x128xf32, #tpu.memory_space<vmem>>, %arg4: memref<512x128xbf16, #tpu.memory_space<vmem>>, %arg5: memref<1x128xf32, #tpu.memory_space<vmem>>, %arg6: memref<1x16x128xf32, #tpu.memory_space<vmem>>) attributes {dimension_semantics = [#tpu.dimension_semantics<parallel>], iteration_bounds = array<i64: 2>, scalar_prefetch = 0 : i64, scratch_operands = 0 : i64, tpu.core_type = #tpu.core_type<tc>, window_params = [{transform_indices = @transform_0, window_bounds = array<i64: 1, 16, 128>}, {pipeline_mode = #tpu.pipeline_mode<synchronous>, transform_indices = @transform_1, window_bounds = array<i64: 384, 128>}, {pipeline_mode = #tpu.pipeline_mode<synchronous>, transform_indices = @transform_2, window_bounds = array<i64: 1, 128>}, {pipeline_mode = #tpu.pipeline_mode<synchronous>, transform_indices = @transform_3, window_bounds = array<i64: 512, 128>}, {pipeline_mode = #tpu.pipeline_mode<synchronous>, transform_indices = @transform_4, window_bounds = array<i64: 1, 128>}, {transform_indices = @transform_5, window_bounds = array<i64: 1, 16, 128>}]} {
    %c0 = arith.constant 0 : index
    %c0_0 = arith.constant 0 : index
    %c0_1 = arith.constant 0 : index
    %0 = vector.load %arg1[%c0, %c0_0, %c0_1] : memref<1x16x128xf32, #tpu.memory_space<vmem>>, vector<1x16x128xf32>
    %1 = vector.shape_cast %0 : vector<1x16x128xf32> to vector<16x128xf32>
    %2 = tpu.iota {dimensions = array<i32: 1>} : vector<1x16x1xi32>
    %3 = vector.shape_cast %2 : vector<1x16x1xi32> to vector<16x1xi32>
    %c0_i32 = arith.constant 0 : i32
    %4 = vector.broadcast %c0_i32 : i32 to vector<16x1xi32>
    %5 = arith.cmpi eq, %3, %4 : vector<16x1xi32>
    %c15_i32 = arith.constant 15 : i32
    %6 = vector.broadcast %c15_i32 : i32 to vector<16x1xi32>
    %7 = arith.cmpi eq, %3, %6 : vector<16x1xi32>
    %8 = arith.truncf %1 : vector<16x128xf32> to vector<16x128xbf16>
    %c1_i32 = arith.constant 1 : i32
    %9 = tpu.dynamic_rotate %1 by %c1_i32 dim 0 : vector<16x128xf32>, i32 -> vector<16x128xf32>
    %cst = arith.constant 0.000000e+00 : f32
    %10 = vector.shape_cast %5 : vector<16x1xi1> to vector<16x1xi1>
    %11 = vector.broadcast %10 : vector<16x1xi1> to vector<16x128xi1>
    %12 = vector.broadcast %cst : f32 to vector<16x128xf32>
    %13 = arith.select %11, %12, %9 : vector<16x128xi1>, vector<16x128xf32>
    %14 = arith.truncf %13 : vector<16x128xf32> to vector<16x128xbf16>
    %c15_i32_2 = arith.constant 15 : i32
    %15 = tpu.dynamic_rotate %1 by %c15_i32_2 dim 0 : vector<16x128xf32>, i32 -> vector<16x128xf32>
    %cst_3 = arith.constant 0.000000e+00 : f32
    %16 = vector.shape_cast %7 : vector<16x1xi1> to vector<16x1xi1>
    %17 = vector.broadcast %16 : vector<16x1xi1> to vector<16x128xi1>
    %18 = vector.broadcast %cst_3 : f32 to vector<16x128xf32>
    %19 = arith.select %17, %18, %15 : vector<16x128xi1>, vector<16x128xf32>
    %20 = arith.truncf %19 : vector<16x128xf32> to vector<16x128xbf16>
    %21 = tpu.concatenate %14, %8, %20 in 1 : vector<16x128xbf16>, vector<16x128xbf16>, vector<16x128xbf16> -> vector<16x384xbf16>
    %c0_4 = arith.constant 0 : index
    %c0_5 = arith.constant 0 : index
    %22 = vector.load %arg2[%c0_4, %c0_5] : memref<384x128xbf16, #tpu.memory_space<vmem>>, vector<384x128xbf16>
    %cst_6 = arith.constant dense<0.000000e+00> : vector<16x128xf32>
    %23 = tpu.matmul %21, %22, %cst_6 {dimension_numbers = #tpu.dot_dimension_numbers<[1], [0], [0], [1], [0, 0, 1, 1], [], []>} : vector<16x384xbf16>, vector<384x128xbf16>, vector<16x128xf32> -> vector<16x128xf32>
    %c0_7 = arith.constant 0 : index
    %c0_8 = arith.constant 0 : index
    %24 = vector.load %arg3[%c0_7, %c0_8] : memref<1x128xf32, #tpu.memory_space<vmem>>, vector<1x128xf32>
    %25 = vector.broadcast %24 : vector<1x128xf32> to vector<16x128xf32>
    %26 = arith.addf %23, %25 : vector<16x128xf32>
    %cst_9 = arith.constant 0.000000e+00 : f32
    %27 = vector.broadcast %cst_9 : f32 to vector<16x128xf32>
    %28 = arith.maximumf %26, %27 : vector<16x128xf32>
    %c1_i32_10 = arith.constant 1 : i32
    %29 = tpu.dynamic_rotate %28 by %c1_i32_10 dim 0 : vector<16x128xf32>, i32 -> vector<16x128xf32>
    %cst_11 = arith.constant 0.000000e+00 : f32
    %30 = vector.shape_cast %5 : vector<16x1xi1> to vector<16x1xi1>
    %31 = vector.broadcast %30 : vector<16x1xi1> to vector<16x128xi1>
    %32 = vector.broadcast %cst_11 : f32 to vector<16x128xf32>
    %33 = arith.select %31, %32, %29 : vector<16x128xi1>, vector<16x128xf32>
    %34 = arith.truncf %33 : vector<16x128xf32> to vector<16x128xbf16>
    %c15_i32_12 = arith.constant 15 : i32
    %35 = tpu.dynamic_rotate %28 by %c15_i32_12 dim 0 : vector<16x128xf32>, i32 -> vector<16x128xf32>
    %cst_13 = arith.constant 0.000000e+00 : f32
    %36 = vector.shape_cast %7 : vector<16x1xi1> to vector<16x1xi1>
    %37 = vector.broadcast %36 : vector<16x1xi1> to vector<16x128xi1>
    %38 = vector.broadcast %cst_13 : f32 to vector<16x128xf32>
    %39 = arith.select %37, %38, %35 : vector<16x128xi1>, vector<16x128xf32>
    %40 = arith.truncf %39 : vector<16x128xf32> to vector<16x128xbf16>
    %41 = arith.truncf %28 : vector<16x128xf32> to vector<16x128xbf16>
    %42 = tpu.concatenate %34, %41, %40, %8 in 1 : vector<16x128xbf16>, vector<16x128xbf16>, vector<16x128xbf16>, vector<16x128xbf16> -> vector<16x512xbf16>
    %c0_14 = arith.constant 0 : index
    %c0_15 = arith.constant 0 : index
    %43 = vector.load %arg4[%c0_14, %c0_15] : memref<512x128xbf16, #tpu.memory_space<vmem>>, vector<512x128xbf16>
    %cst_16 = arith.constant dense<0.000000e+00> : vector<16x128xf32>
    %44 = tpu.matmul %42, %43, %cst_16 {dimension_numbers = #tpu.dot_dimension_numbers<[1], [0], [0], [1], [0, 0, 1, 1], [], []>} : vector<16x512xbf16>, vector<512x128xbf16>, vector<16x128xf32> -> vector<16x128xf32>
    %c0_17 = arith.constant 0 : index
    %c0_18 = arith.constant 0 : index
    %45 = vector.load %arg5[%c0_17, %c0_18] : memref<1x128xf32, #tpu.memory_space<vmem>>, vector<1x128xf32>
    %46 = vector.broadcast %45 : vector<1x128xf32> to vector<16x128xf32>
    %47 = arith.addf %44, %46 : vector<16x128xf32>
    %cst_19 = arith.constant 0.000000e+00 : f32
    %48 = vector.broadcast %cst_19 : f32 to vector<16x128xf32>
    %49 = arith.maximumf %47, %48 : vector<16x128xf32>
    %50 = vector.shape_cast %49 : vector<16x128xf32> to vector<1x16x128xf32>
    %c0_20 = arith.constant 0 : index
    %c0_21 = arith.constant 0 : index
    %c0_22 = arith.constant 0 : index
    %51 = vector.load %arg6[%c0_20, %c0_21, %c0_22] : memref<1x16x128xf32, #tpu.memory_space<vmem>>, vector<1x16x128xf32>
    tpu.vector_store %arg6[%c0_20, %c0_21, %c0_22], %50 {strides = array<i32>} : memref<1x16x128xf32, #tpu.memory_space<vmem>>, vector<1x16x128xf32>,
    return
  }
  func.func @transform_0(%arg0: i32) -> (i32, i32, i32) {
    %c0_i32 = arith.constant 0 : i32
    %c0_i32_0 = arith.constant 0 : i32
    %c0_i32_1 = arith.constant 0 : i32
    return %arg0, %c0_i32, %c0_i32_0 : i32, i32, i32
  }
  func.func @transform_1(%arg0: i32) -> (i32, i32) {
    %c0_i32 = arith.constant 0 : i32
    %c0_i32_0 = arith.constant 0 : i32
    %c0_i32_1 = arith.constant 0 : i32
    return %c0_i32, %c0_i32_0 : i32, i32
  }
  func.func @transform_2(%arg0: i32) -> (i32, i32) {
    %c0_i32 = arith.constant 0 : i32
    %c0_i32_0 = arith.constant 0 : i32
    %c0_i32_1 = arith.constant 0 : i32
    return %c0_i32, %c0_i32_0 : i32, i32
  }
  func.func @transform_3(%arg0: i32) -> (i32, i32) {
    %c0_i32 = arith.constant 0 : i32
    %c0_i32_0 = arith.constant 0 : i32
    %c0_i32_1 = arith.constant 0 : i32
    return %c0_i32, %c0_i32_0 : i32, i32
  }
  func.func @transform_4(%arg0: i32) -> (i32, i32) {
    %c0_i32 = arith.constant 0 : i32
    %c0_i32_0 = arith.constant 0 : i32
    %c0_i32_1 = arith.constant 0 : i32
    return %c0_i32, %c0_i32_0 : i32, i32
  }
  func.func @transform_5(%arg0: i32) -> (i32, i32, i32) {
    %c0_i32 = arith.constant 0 : i32
    %c0_i32_0 = arith.constant 0 : i32
    %c0_i32_1 = arith.constant 0 : i32
    return %arg0, %c0_i32, %c0_i32_0 : i32, i32, i32
  }
}

</mosaic_0001>

<llo_original>
// kernel: tpu_custom_call.1
$region0: #{tpu_custom_call.1}
  #allocation0 [shape = 'u32[]', space=smem, size = 0x4, offset = 0x4, fixed_abs, tag = 'smem constant byte address 0x4 - core index']
  #allocation1 [shape = 'u32[144,128]{1,0:T(1,128)}', space=vmem, size = 0x12000, scoped, tag = 'internal scratch']
  %s0 = inlined_call_operand.hbm [shape: f32[2,16,128], index: 0, kind: input, shape index: {}]
  %s1 = inlined_call_operand.hbm [shape: bf16[384,128], index: 1, kind: input, shape index: {}]
  %s2 = inlined_call_operand.vmem [shape: f32[1,128], index: 2, kind: input, shape index: {}]
  %s3 = inlined_call_operand.hbm [shape: bf16[512,128], index: 3, kind: input, shape index: {}]
  %s4 = inlined_call_operand.vmem [shape: f32[1,128], index: 4, kind: input, shape index: {}]
  %s5 = inlined_call_operand.hbm [shape: f32[2,16,128], index: 5, kind: output, shape index: {}]
  %s6 = sld [smem:[#allocation0]]
  $region65: #{tpu_custom_call.1} parent=0
    _
  %s8 = ssub.s32 1, %s6
  %s9 = scalar_select 0, %s8, %s6
  $region1: #{tpu_custom_call.1} parent=0
    #allocation2 [shape = 'u8[16384]{0}', space=vmem, size = 0x4000, scoped, tag = 'input window, operand 0']
    #allocation3 [shape = 's32[2]{0}', space=sflag, size = 0x8, scoped, tag = 'scoped memory for tpu_custom_call.1']
    #allocation4 [shape = 's32[2]{0}', space=sflag, size = 0x8, scoped, tag = 'scoped memory for tpu_custom_call.1']
    #allocation5 [shape = 'u8[98304]{0}', space=vmem, size = 0x18000, scoped, tag = 'input window, operand 1, single buffered']
    #allocation6 [shape = 's32[1]{0}', space=sflag, size = 0x4, scoped, tag = 'scoped memory for tpu_custom_call.1']
    #allocation7 [shape = 'u8[131072]{0}', space=vmem, size = 0x20000, scoped, tag = 'input window, operand 3, single buffered']
    #allocation8 [shape = 'u8[16384]{0}', space=vmem, size = 0x4000, scoped, tag = 'output window, operand 0']
    %10 = vsyncpa [#allocation3], 0
    %s11 = scalar_lea.sflag [#allocation3], 1
    %12 = vsyncpa %s11, 0
    %13 = vsyncpa [#allocation6], 0
    %14 = vsyncpa [#allocation4], 0
    %s15 = scalar_lea.sflag [#allocation4], 1
    %16 = vsyncpa %s15, 0
    loop: start=0, step=1, limit=4
    $region2: #{tpu_custom_call.1} parent=1 // loop_pre_header
      _
    $region3: #{tpu_custom_call.1} parent=1 // loop_header
      %s18 = sphi 0, %s22
      %p19 = scmp.ge.s32.totalorder %s18, 4
      %s28 = sphi 0, %s30
      %s31 = sphi 0, %s28
      %s32 = sphi 0, %s31
      %s48 = sphi 0, %s32
      %s52 = sphi 0, %s52
      %s54 = sphi 0, %s52
      %s55 = sphi 0, %s54
      %s69 = sphi 0, %s55
      %s73 = sphi 0, %s73
      %s75 = sphi 0, %s73
      %s76 = sphi 0, %s75
      %s90 = sphi 0, %s76
      %s94 = sphi 0, %s94
      %s96 = sphi 0, %s94
      %s97 = sphi 0, %s96
      %s111 = sphi 0, %s97
      %s115 = sphi 0, %s115
      %s117 = sphi 0, %s115
      %s118 = sphi 0, %s117
      %s132 = sphi 0, %s118
      %s138 = sphi 0, %s140
      %s141 = sphi 0, %s138
      %s142 = sphi 0, %s141
      %s158 = sphi 0, %s142
    $region4: #{tpu_custom_call.1} parent=1 // loop_header_branch
      %21 = sbr.rel (%p19) target = $region8
    $region5: #{tpu_custom_call.1} parent=1 // loop_body
      %s23 = ssub.s32 %s18, 1
      %s24 = ssub.s32 %s18, 2
      %s25 = sadd.s32 %s18, 1
      %s26 = ssub.s32 %s18, %s25
      %p27 = scmp.eq.s32.totalorder %s26, 0
      %s29 = sadd.s32 %s28, 1
      %s30 = scalar_select %p27, %s28, %s29
      %p33 = pneg %p27
      %p34 = scmp.eq.s32.totalorder %s18, 1
      %p35 = por %p33, %p34
      %p36 = scmp.ne.s32.totalorder %s28, %s31
      %p37 = scmp.eq.s32.totalorder %s18, 0
      %p38 = por %p36, %p37
      %p39 = scmp.ne.s32.totalorder %s28, %s31
      %p40 = scmp.eq.s32.totalorder %s23, 1
      %p41 = por %p39, %p40
      %p42 = scmp.ne.s32.totalorder %s31, %s32
      %p43 = scmp.eq.s32.totalorder %s23, 0
      %p44 = por %p42, %p43
      %p45 = scmp.ne.s32.totalorder %s31, %s32
      %p46 = scmp.eq.s32.totalorder %s24, 1
      %p47 = por %p45, %p46
      %p49 = scmp.ne.s32.totalorder %s32, %s48
      %p50 = scmp.eq.s32.totalorder %s24, 0
      %p51 = por %p49, %p50
      %s53 = sadd.s32 %s52, 1
      %p56 = scmp.eq.s32.totalorder %s18, 1
      %p57 = scmp.ne.s32.totalorder %s52, %s54
      %p58 = scmp.eq.s32.totalorder %s18, 0
      %p59 = por %p57, %p58
      %p60 = scmp.ne.s32.totalorder %s52, %s54
      %p61 = scmp.eq.s32.totalorder %s23, 1
      %p62 = por %p60, %p61
      %p63 = scmp.ne.s32.totalorder %s54, %s55
      %p64 = scmp.eq.s32.totalorder %s23, 0
      %p65 = por %p63, %p64
      %p66 = scmp.ne.s32.totalorder %s54, %s55
      %p67 = scmp.eq.s32.totalorder %s24, 1
      %p68 = por %p66, %p67
      %p70 = scmp.ne.s32.totalorder %s55, %s69
      %p71 = scmp.eq.s32.totalorder %s24, 0
      %p72 = por %p70, %p71
      %s74 = sadd.s32 %s73, 1
      %p77 = scmp.eq.s32.totalorder %s18, 1
      %p78 = scmp.ne.s32.totalorder %s73, %s75
      %p79 = scmp.eq.s32.totalorder %s18, 0
      %p80 = por %p78, %p79
      %p81 = scmp.ne.s32.totalorder %s73, %s75
      %p82 = scmp.eq.s32.totalorder %s23, 1
      %p83 = por %p81, %p82
      %p84 = scmp.ne.s32.totalorder %s75, %s76
      %p85 = scmp.eq.s32.totalorder %s23, 0
      %p86 = por %p84, %p85
      %p87 = scmp.ne.s32.totalorder %s75, %s76
      %p88 = scmp.eq.s32.totalorder %s24, 1
      %p89 = por %p87, %p88
      %p91 = scmp.ne.s32.totalorder %s76, %s90
      %p92 = scmp.eq.s32.totalorder %s24, 0
      %p93 = por %p91, %p92
      %s95 = sadd.s32 %s94, 1
      %p98 = scmp.eq.s32.totalorder %s18, 1
      %p99 = scmp.ne.s32.totalorder %s94, %s96
      %p100 = scmp.eq.s32.totalorder %s18, 0
      %p101 = por %p99, %p100
      %p102 = scmp.ne.s32.totalorder %s94, %s96
      %p103 = scmp.eq.s32.totalorder %s23, 1
      %p104 = por %p102, %p103
      %p105 = scmp.ne.s32.totalorder %s96, %s97
      %p106 = scmp.eq.s32.totalorder %s23, 0
      %p107 = por %p105, %p106
      %p108 = scmp.ne.s32.totalorder %s96, %s97
      %p109 = scmp.eq.s32.totalorder %s24, 1
      %p110 = por %p108, %p109
      %p112 = scmp.ne.s32.totalorder %s97, %s111
      %p113 = scmp.eq.s32.totalorder %s24, 0
      %p114 = por %p112, %p113
      %s116 = sadd.s32 %s115, 1
      %p119 = scmp.eq.s32.totalorder %s18, 1
      %p120 = scmp.ne.s32.totalorder %s115, %s117
      %p121 = scmp.eq.s32.totalorder %s18, 0
      %p122 = por %p120, %p121
      %p123 = scmp.ne.s32.totalorder %s115, %s117
      %p124 = scmp.eq.s32.totalorder %s23, 1
      %p125 = por %p123, %p124
      %p126 = scmp.ne.s32.totalorder %s117, %s118
      %p127 = scmp.eq.s32.totalorder %s23, 0
      %p128 = por %p126, %p127
      %p129 = scmp.ne.s32.totalorder %s117, %s118
      %p130 = scmp.eq.s32.totalorder %s24, 1
      %p131 = por %p129, %p130
      %p133 = scmp.ne.s32.totalorder %s118, %s132
      %p134 = scmp.eq.s32.totalorder %s24, 0
      %p135 = por %p133, %p134
      %s136 = ssub.s32 %s18, %s25
      %p137 = scmp.eq.s32.totalorder %s136, 0
      %s139 = sadd.s32 %s138, 1
      %s140 = scalar_select %p137, %s138, %s139
      %p143 = pneg %p137
      %p144 = scmp.eq.s32.totalorder %s18, 1
      %p145 = por %p143, %p144
      %p146 = scmp.ne.s32.totalorder %s138, %s141
      %p147 = scmp.eq.s32.totalorder %s18, 0
      %p148 = por %p146, %p147
      %p149 = scmp.ne.s32.totalorder %s138, %s141
      %p150 = scmp.eq.s32.totalorder %s23, 1
      %p151 = por %p149, %p150
      %p152 = scmp.ne.s32.totalorder %s141, %s142
      %p153 = scmp.eq.s32.totalorder %s23, 0
      %p154 = por %p152, %p153
      %p155 = scmp.ne.s32.totalorder %s141, %s142
      %p156 = scmp.eq.s32.totalorder %s24, 1
      %p157 = por %p155, %p156
      %p159 = scmp.ne.s32.totalorder %s142, %s158
      %p160 = scmp.eq.s32.totalorder %s24, 0
      %p161 = por %p159, %p160
      %p162 = scmp.le.s32.totalorder 1, %s18
      %p163 = scmp.lt.s32.totalorder %s18, 3
      %p164 = pnand %p162, %p163
      %p165 = pneg %p164
      // Predicated region
      $region9: #{tpu_custom_call.1} parent=5 // pred_check
        _
      $region10: #{tpu_custom_call.1} parent=5 // pred_check_branch
        %167 = sbr.rel (%p164) target = $region12
      $region11: #{tpu_custom_call.1} parent=5 // pred_region
        %s168 = ssub.s32 %s18, 1
        // Predicated region
        $region13: #{tpu_custom_call.1} parent=11 // pred_check
          %p169 = pneg %p65
        $region14: #{tpu_custom_call.1} parent=11 // pred_check_branch
          %171 = sbr.rel (%p169) target = $region16
        $region15: #{tpu_custom_call.1} parent=11 // pred_region
          %s173 = ssub.s32 3072, 3072
          %174 = vsyncadd [#allocation6], %s173
          %s175 = sshll.u32 [#allocation5], 4
          %s176 = int_to_ptr.vmem [resolvable:$true] %s175
          %181 = dma.hbm_to_vmem [thread:$0]  %s1, 3072, %s176, [#allocation6], 64, 64, 4
        $region16: #{tpu_custom_call.1} parent=11 // pred_fallthru
          _
        // Predicated region
        $region17: #{tpu_custom_call.1} parent=11 // pred_check
          %p182 = pneg %p86
        $region18: #{tpu_custom_call.1} parent=11 // pred_check_branch
          %184 = sbr.rel (%p182) target = $region20
        $region19: #{tpu_custom_call.1} parent=11 // pred_region
          _
        $region20: #{tpu_custom_call.1} parent=11 // pred_fallthru
          _
        // Predicated region
        $region21: #{tpu_custom_call.1} parent=11 // pred_check
          %p185 = pneg %p107
        $region22: #{tpu_custom_call.1} parent=11 // pred_check_branch
          %187 = sbr.rel (%p185) target = $region24
        $region23: #{tpu_custom_call.1} parent=11 // pred_region
          %s189 = ssub.s32 4096, 4096
          %190 = vsyncadd [#allocation6], %s189
          %s191 = sshll.u32 [#allocation7], 4
          %s192 = int_to_ptr.vmem [resolvable:$true] %s191
          %197 = dma.hbm_to_vmem [thread:$0]  %s3, 4096, %s192, [#allocation6], 64, 64, 4
        $region24: #{tpu_custom_call.1} parent=11 // pred_fallthru
          _
        // Predicated region
        $region25: #{tpu_custom_call.1} parent=11 // pred_check
          %p198 = pneg %p128
        $region26: #{tpu_custom_call.1} parent=11 // pred_check_branch
          %200 = sbr.rel (%p198) target = $region28
        $region27: #{tpu_custom_call.1} parent=11 // pred_region
          _
        $region28: #{tpu_custom_call.1} parent=11 // pred_fallthru
          _
      $region12: #{tpu_custom_call.1} parent=5 // pred_fallthru
        _
      %p201 = scmp.lt.s32.totalorder %s18, 2
      // Predicated region
      $region29: #{tpu_custom_call.1} parent=5 // pred_check
        %p202 = pneg %p201
      $region30: #{tpu_custom_call.1} parent=5 // pred_check_branch
        %204 = sbr.rel (%p202) target = $region32
      $region31: #{tpu_custom_call.1} parent=5 // pred_region
        // Predicated region
        $region33: #{tpu_custom_call.1} parent=31 // pred_check
          %p205 = pneg %p38
        $region34: #{tpu_custom_call.1} parent=31 // pred_check_branch
          %207 = sbr.rel (%p205) target = $region36
        $region35: #{tpu_custom_call.1} parent=31 // pred_region
          %s208 = sand.u32 %s28, 1
          %s209 = scalar_lea.sflag [#allocation3], %s208
          %s210 = sand.u32 %s28, 1
          %s211 = smul.addr %s210, 16
          %s212 = scalar_lea.vmem [#allocation2], %s211
          %s214 = ssub.s32 256, 256
          %215 = vsyncadd %s209, %s214
          %s216 = smul.addr %s18, 2
          %s217 = smul.addr %s216, 128
          %s218 = scalar_lea.hbm %s0, %s217
          %s219 = sshll.u32 %s212, 4
          %s220 = int_to_ptr.vmem [resolvable:$true] %s219
          %225 = dma.hbm_to_vmem [thread:$0]  %s218, 256, %s220, %s209, 128, 128, 8
        $region36: #{tpu_custom_call.1} parent=31 // pred_fallthru
          _
      $region32: #{tpu_custom_call.1} parent=5 // pred_fallthru
        _
      %p226 = scmp.le.s32.totalorder 1, %s18
      %p227 = scmp.lt.s32.totalorder %s18, 3
      %p228 = pnand %p226, %p227
      %p229 = pneg %p228
      // Predicated region
      $region37: #{tpu_custom_call.1} parent=5 // pred_check
        _
      $region38: #{tpu_custom_call.1} parent=5 // pred_check_branch
        %231 = sbr.rel (%p228) target = $region40
      $region39: #{tpu_custom_call.1} parent=5 // pred_region
        %s232 = ssub.s32 %s18, 1
        %s233 = sand.u32 %s31, 1
        %s234 = scalar_lea.sflag [#allocation3], %s233
        %s235 = sand.u32 %s31, 1
        %s236 = smul.addr %s235, 16
        %s237 = scalar_lea.vmem [#allocation2], %s236
        // Predicated region
        $region41: #{tpu_custom_call.1} parent=39 // pred_check
          %p238 = pneg %p44
        $region42: #{tpu_custom_call.1} parent=39 // pred_check_branch
          %240 = sbr.rel (%p238) target = $region44
        $region43: #{tpu_custom_call.1} parent=39 // pred_region
          %241 = dma.done %s234, 256
        $region44: #{tpu_custom_call.1} parent=39 // pred_fallthru
          _
        // Predicated region
        $region45: #{tpu_custom_call.1} parent=39 // pred_check
          %p242 = pneg %p65
        $region46: #{tpu_custom_call.1} parent=39 // pred_check_branch
          %244 = sbr.rel (%p242) target = $region48
        $region47: #{tpu_custom_call.1} parent=39 // pred_region
          %245 = dma.done [#allocation6], 3072
        $region48: #{tpu_custom_call.1} parent=39 // pred_fallthru
          _
        // Predicated region
        $region49: #{tpu_custom_call.1} parent=39 // pred_check
          %p246 = pneg %p107
        $region50: #{tpu_custom_call.1} parent=39 // pred_check_branch
          %248 = sbr.rel (%p246) target = $region52
        $region51: #{tpu_custom_call.1} parent=39 // pred_region
          %249 = dma.done [#allocation6], 4096
        $region52: #{tpu_custom_call.1} parent=39 // pred_fallthru
          _
        %s250 = sand.u32 %s31, 1
        %s251 = scalar_lea.sflag [#allocation3], %s250
        %s252 = sand.u32 %s31, 1
        %s253 = smul.addr %s252, 16
        %s254 = scalar_lea.vmem [#allocation2], %s253
        %p255 = pneg %p44
        %p256 = pneg %p41
        %p257 = pneg %p65
        %p258 = pneg %p62
        %p259 = pneg %p86
        %p260 = pneg %p83
        %p261 = pneg %p107
        %p262 = pneg %p104
        %p263 = pneg %p128
        %p264 = pneg %p125
        %p265 = pneg %p154
        %p266 = pneg %p151
        %s267 = sand.u32 %s141, 1
        %s268 = scalar_lea.sflag [#allocation4], %s267
        %s269 = sand.u32 %s141, 1
        %s270 = smul.addr %s269, 16
        %s271 = scalar_lea.vmem [#allocation8], %s270
        %v273 = vld [vmem:[%s237] sm:$0xff]
        %v274 = vld [vmem:[%s237 + $0x8] sm:$0xff]
        %v275 = vlaneseq
        %v276 = vshrl.u32 %v275, 7
        %v277 = vadd.s32 %v276, 8
        %vm278 = vcmp.eq.s32.totalorder %v276, 0
        %vm279 = vcmp.eq.s32.totalorder %v277, 0
        %vm280 = vcmp.eq.s32.totalorder %v276, 15
        %vm281 = vcmp.eq.s32.totalorder %v277, 15
        %v282 = vpack.c.bf16 %v274, %v273
        %v283 = vrot.slane %v273, 7
        %v284 = vrot.slane %v274, 7
        %vm285 = vcmp.lt.s32.totalorder %v276, 1
        %v286 = vsel %vm285, %v283, %v284
        %v287 = vsel %vm285, %v284, %v283
        %v288 = vsel %vm278, 1, 0
        %v289 = vsel %vm279, 1, 0
        %vm290 = vcmp.eq.s32.totalorder %v288, 1
        %vm291 = vcmp.eq.s32.totalorder %v289, 1
        %v292 = vsel %vm290, 0.0, %v287
        %v293 = vsel %vm291, 0.0, %v286
        %v294 = vpack.c.bf16 %v293, %v292
        %v295 = vrot.slane %v273, 1
        %v296 = vrot.slane %v274, 1
        %vm297 = vcmp.lt.s32.totalorder %v276, 7
        %v298 = vsel %vm297, %v295, %v296
        %v299 = vsel %vm297, %v296, %v295
        %v300 = vsel %vm280, 1, 0
        %v301 = vsel %vm281, 1, 0
        %vm302 = vcmp.eq.s32.totalorder %v300, 1
        %vm303 = vcmp.eq.s32.totalorder %v301, 1
        %v304 = vsel %vm302, 0.0, %v298
        %v305 = vsel %vm303, 0.0, %v299
        %v306 = vpack.c.bf16 %v305, %v304
        %v307 = vld [vmem:[#allocation5] sm:$0xf]
        %v308 = vld [vmem:[#allocation5 + $0x4] sm:$0xf]
        %v309 = vld [vmem:[#allocation5 + $0x8] sm:$0xf]
        %v310 = vld [vmem:[#allocation5 + $0xc] sm:$0xf]
        %v311 = vld [vmem:[#allocation5 + $0x10] sm:$0xf]
        %v312 = vld [vmem:[#allocation5 + $0x14] sm:$0xf]
        %v313 = vld [vmem:[#allocation5 + $0x18] sm:$0xf]
        %v314 = vld [vmem:[#allocation5 + $0x1c] sm:$0xf]
        %v315 = vld [vmem:[#allocation5 + $0x20] sm:$0xf]
        %v316 = vld [vmem:[#allocation5 + $0x24] sm:$0xf]
        %v317 = vld [vmem:[#allocation5 + $0x28] sm:$0xf]
        %v318 = vld [vmem:[#allocation5 + $0x2c] sm:$0xf]
        %v319 = vld [vmem:[#allocation5 + $0x30] sm:$0xf]
        %v320 = vld [vmem:[#allocation5 + $0x34] sm:$0xf]
        %v321 = vld [vmem:[#allocation5 + $0x38] sm:$0xf]
        %v322 = vld [vmem:[#allocation5 + $0x3c] sm:$0xf]
        %v323 = vld [vmem:[#allocation5 + $0x40] sm:$0xf]
        %v324 = vld [vmem:[#allocation5 + $0x44] sm:$0xf]
        %v325 = vld [vmem:[#allocation5 + $0x48] sm:$0xf]
        %v326 = vld [vmem:[#allocation5 + $0x4c] sm:$0xf]
        %v327 = vld [vmem:[#allocation5 + $0x50] sm:$0xf]
        %v328 = vld [vmem:[#allocation5 + $0x54] sm:$0xf]
        %v329 = vld [vmem:[#allocation5 + $0x58] sm:$0xf]
        %v330 = vld [vmem:[#allocation5 + $0x5c] sm:$0xf]
        %v331 = vld [vmem:[#allocation5 + $0x60] sm:$0xf]
        %v332 = vld [vmem:[#allocation5 + $0x64] sm:$0xf]
        %v333 = vld [vmem:[#allocation5 + $0x68] sm:$0xf]
        %v334 = vld [vmem:[#allocation5 + $0x6c] sm:$0xf]
        %v335 = vld [vmem:[#allocation5 + $0x70] sm:$0xf]
        %v336 = vld [vmem:[#allocation5 + $0x74] sm:$0xf]
        %v337 = vld [vmem:[#allocation5 + $0x78] sm:$0xf]
        %v338 = vld [vmem:[#allocation5 + $0x7c] sm:$0xf]
        %v339 = vld [vmem:[#allocation5 + $0x80] sm:$0xf]
        %v340 = vld [vmem:[#allocation5 + $0x84] sm:$0xf]
        %v341 = vld [vmem:[#allocation5 + $0x88] sm:$0xf]
        %v342 = vld [vmem:[#allocation5 + $0x8c] sm:$0xf]
        %v343 = vld [vmem:[#allocation5 + $0x90] sm:$0xf]
        %v344 = vld [vmem:[#allocation5 + $0x94] sm:$0xf]
        %v345 = vld [vmem:[#allocation5 + $0x98] sm:$0xf]
        %v346 = vld [vmem:[#allocation5 + $0x9c] sm:$0xf]
        %v347 = vld [vmem:[#allocation5 + $0xa0] sm:$0xf]
        %v348 = vld [vmem:[#allocation5 + $0xa4] sm:$0xf]
        %v349 = vld [vmem:[#allocation5 + $0xa8] sm:$0xf]
        %v350 = vld [vmem:[#allocation5 + $0xac] sm:$0xf]
        %v351 = vld [vmem:[#allocation5 + $0xb0] sm:$0xf]
        %v352 = vld [vmem:[#allocation5 + $0xb4] sm:$0xf]
        %v353 = vld [vmem:[#allocation5 + $0xb8] sm:$0xf]
        %v354 = vld [vmem:[#allocation5 + $0xbc] sm:$0xf]
        %v355 = vld [vmem:[%s2] sm:$0x1]
        %v357 = vlaneseq
        %v358 = vshrl.u32 %v357, 7
        %v359 = vsub.s32 0, %v358
        %v360 = vrot.slane %v355, %v359
        %v410 = vunpack.c.l.b16 %v307
        %v411 = vunpack.c.l.b16 %v308
        %v412 = vunpack.c.l.b16 %v309
        %v413 = vunpack.c.l.b16 %v310
        %v414 = vunpack.c.l.b16 %v311
        %v415 = vunpack.c.l.b16 %v312
        %v416 = vunpack.c.l.b16 %v313
        %v417 = vunpack.c.l.b16 %v314
        %v418 = vunpack.c.l.b16 %v315
        %v419 = vunpack.c.l.b16 %v316
        %v420 = vunpack.c.l.b16 %v317
        %v421 = vunpack.c.l.b16 %v318
        %v422 = vunpack.c.l.b16 %v319
        %v423 = vunpack.c.l.b16 %v320
        %v424 = vunpack.c.l.b16 %v321
        %v425 = vunpack.c.l.b16 %v322
        %v426 = vunpack.c.l.b16 %v323
        %v427 = vunpack.c.l.b16 %v324
        %v428 = vunpack.c.l.b16 %v325
        %v429 = vunpack.c.l.b16 %v326
        %v430 = vunpack.c.l.b16 %v327
        %v431 = vunpack.c.l.b16 %v328
        %v432 = vunpack.c.l.b16 %v329
        %v433 = vunpack.c.l.b16 %v330
        %v434 = vunpack.c.l.b16 %v331
        %v435 = vunpack.c.l.b16 %v332
        %v436 = vunpack.c.l.b16 %v333
        %v437 = vunpack.c.l.b16 %v334
        %v438 = vunpack.c.l.b16 %v335
        %v439 = vunpack.c.l.b16 %v336
        %v440 = vunpack.c.l.b16 %v337
        %v441 = vunpack.c.l.b16 %v338
        %v442 = vunpack.c.l.b16 %v339
        %v443 = vunpack.c.l.b16 %v340
        %v444 = vunpack.c.l.b16 %v341
        %v445 = vunpack.c.l.b16 %v342
        %v446 = vunpack.c.l.b16 %v343
        %v447 = vunpack.c.l.b16 %v344
        %v448 = vunpack.c.l.b16 %v345
        %v449 = vunpack.c.l.b16 %v346
        %v450 = vunpack.c.l.b16 %v347
        %v451 = vunpack.c.l.b16 %v348
        %v452 = vunpack.c.l.b16 %v349
        %v453 = vunpack.c.l.b16 %v350
        %v454 = vunpack.c.l.b16 %v351
        %v455 = vunpack.c.l.b16 %v352
        %v456 = vunpack.c.l.b16 %v353
        %v457 = vunpack.c.l.b16 %v354
        %v458 = vpack.c.b16 %v411, %v410
        %v459 = vpack.c.b16 %v413, %v412
        %v460 = vpack.c.b16 %v415, %v414
        %v461 = vpack.c.b16 %v417, %v416
        %v462 = vpack.c.b16 %v419, %v418
        %v463 = vpack.c.b16 %v421, %v420
        %v464 = vpack.c.b16 %v423, %v422
        %v465 = vpack.c.b16 %v425, %v424
        %v466 = vpack.c.b16 %v427, %v426
        %v467 = vpack.c.b16 %v429, %v428
        %v468 = vpack.c.b16 %v431, %v430
        %v469 = vpack.c.b16 %v433, %v432
        %v470 = vpack.c.b16 %v435, %v434
        %v471 = vpack.c.b16 %v437, %v436
        %v472 = vpack.c.b16 %v439, %v438
        %v473 = vpack.c.b16 %v441, %v440
        %v474 = vpack.c.b16 %v443, %v442
        %v475 = vpack.c.b16 %v445, %v444
        %v476 = vpack.c.b16 %v447, %v446
        %v477 = vpack.c.b16 %v449, %v448
        %v478 = vpack.c.b16 %v451, %v450
        %v479 = vpack.c.b16 %v453, %v452
        %v480 = vpack.c.b16 %v455, %v454
        %v481 = vpack.c.b16 %v457, %v456
        %506 = vmatprep.subr.bf16.mxu0 0
        %507 = vmatpush1.bf16.msra.mxu0 %v465
        %508 = vmatprep.subr.bf16.mxu0 0
        %509 = vmatpush1.bf16.msra.mxu0 %v464
        %510 = vmatprep.subr.bf16.mxu0 0
        %511 = vmatpush1.bf16.msra.mxu0 %v463
        %512 = vmatprep.subr.bf16.mxu0 0
        %513 = vmatpush1.bf16.msra.mxu0 %v462
        %514 = vmatprep.subr.bf16.mxu0 0
        %515 = vmatpush1.bf16.msra.mxu0 %v461
        %516 = vmatprep.subr.bf16.mxu0 0
        %517 = vmatpush1.bf16.msra.mxu0 %v460
        %518 = vmatprep.subr.bf16.mxu0 0
        %519 = vmatpush1.bf16.msra.mxu0 %v459
        %520 = vmatprep.subr.bf16.mxu0 0
        %521 = vmatpush1.bf16.msra.mxu0 %v458
        %522 = vmatprep.subr.bf16.mxu0 0
        %523 = vmatpush2.bf16.msra.mxu0 %v473
        %524 = vmatprep.subr.bf16.mxu0 0
        %525 = vmatpush2.bf16.msra.mxu0 %v472
        %526 = vmatprep.subr.bf16.mxu0 0
        %527 = vmatpush2.bf16.msra.mxu0 %v471
        %528 = vmatprep.subr.bf16.mxu0 0
        %529 = vmatpush2.bf16.msra.mxu0 %v470
        %530 = vmatprep.subr.bf16.mxu0 0
        %531 = vmatpush2.bf16.msra.mxu0 %v469
        %532 = vmatprep.subr.bf16.mxu0 0
        %533 = vmatpush2.bf16.msra.mxu0 %v468
        %534 = vmatprep.subr.bf16.mxu0 0
        %535 = vmatpush2.bf16.msra.mxu0 %v467
        %536 = vmatprep.subr.bf16.mxu0 0
        %537 = vmatpush2.bf16.msra.mxu0 %v466
        %538 = vmatprep.mubr.bf16.mxu0 %v282
        %539 = vmatmul.mubr.bf16.gmra.mxu0 %v294
        %v540 = vpop.f32.mrf.mxu0
        %v541 = vadd.f32 %v360, %v540
        %v542 = vpop.f32.mrf.mxu0
        %v543 = vpop.f32.mrf.mxu0
        %v544 = vadd.f32 %v360, %v543
        %v545 = vpop.f32.mrf.mxu0
        %546 = vdwg.mxu0
        %547 = vmatprep.subr.bf16.mxu0 0
        %548 = vmatpush1.bf16.msra.mxu0 %v481
        %549 = vmatprep.subr.bf16.mxu0 0
        %550 = vmatpush1.bf16.msra.mxu0 %v480
        %551 = vmatprep.subr.bf16.mxu0 0
        %552 = vmatpush1.bf16.msra.mxu0 %v479
        %553 = vmatprep.subr.bf16.mxu0 0
        %554 = vmatpush1.bf16.msra.mxu0 %v478
        %555 = vmatprep.subr.bf16.mxu0 0
        %556 = vmatpush1.bf16.msra.mxu0 %v477
        %557 = vmatprep.subr.bf16.mxu0 0
        %558 = vmatpush1.bf16.msra.mxu0 %v476
        %559 = vmatprep.subr.bf16.mxu0 0
        %560 = vmatpush1.bf16.msra.mxu0 %v475
        %561 = vmatprep.subr.bf16.mxu0 0
        %562 = vmatpush1.bf16.msra.mxu0 %v474
        %563 = vmatprep.subr.bf16.mxu0 0
        %564 = vmatpush2.bf16.msra.mxu0 0
        %565 = vmatprep.subr.bf16.mxu0 0
        %566 = vmatpush2.bf16.msra.mxu0 0
        %567 = vmatprep.subr.bf16.mxu0 0
        %568 = vmatpush2.bf16.msra.mxu0 0
        %569 = vmatprep.subr.bf16.mxu0 0
        %570 = vmatpush2.bf16.msra.mxu0 0
        %571 = vmatprep.subr.bf16.mxu0 0
        %572 = vmatpush2.bf16.msra.mxu0 0
        %573 = vmatprep.subr.bf16.mxu0 0
        %574 = vmatpush2.bf16.msra.mxu0 0
        %575 = vmatprep.subr.bf16.mxu0 0
        %576 = vmatpush2.bf16.msra.mxu0 0
        %577 = vmatprep.subr.bf16.mxu0 0
        %578 = vmatpush2.bf16.msra.mxu0 0
        %579 = vmatprep.mubr.bf16.mxu0 0
        %580 = vmatmul.mubr.bf16.gmra.mxu0 %v306
        %v581 = vpop.f32.mrf.mxu0
        %v582 = vadd.f32 %v541, %v581
        %v583 = vpop.f32.mrf.mxu0
        %v584 = vpop.f32.mrf.mxu0
        %v585 = vadd.f32 %v544, %v584
        %v586 = vpop.f32.mrf.mxu0
        %587 = vdwg.mxu0
        %v588 = vmax.f32 %v582, 0.0
        %v589 = vmax.f32 %v585, 0.0
        %v590 = vrot.slane %v588, 7
        %v591 = vrot.slane %v589, 7
        %v592 = vsel %vm285, %v590, %v591
        %v593 = vsel %vm285, %v591, %v590
        %v594 = vsel %vm290, 0.0, %v593
        %v595 = vsel %vm291, 0.0, %v592
        %v596 = vpack.c.bf16 %v595, %v594
        %v597 = vrot.slane %v588, 1
        %v598 = vrot.slane %v589, 1
        %v599 = vsel %vm297, %v597, %v598
        %v600 = vsel %vm297, %v598, %v597
        %v601 = vsel %vm302, 0.0, %v599
        %v602 = vsel %vm303, 0.0, %v600
        %v603 = vpack.c.bf16 %v602, %v601
        %v604 = vpack.c.bf16 %v589, %v588
        %v605 = vld [vmem:[#allocation7] sm:$0xf]
        %v606 = vld [vmem:[#allocation7 + $0x4] sm:$0xf]
        %v607 = vld [vmem:[#allocation7 + $0x8] sm:$0xf]
        %v608 = vld [vmem:[#allocation7 + $0xc] sm:$0xf]
        %v609 = vld [vmem:[#allocation7 + $0x10] sm:$0xf]
        %v610 = vld [vmem:[#allocation7 + $0x14] sm:$0xf]
        %v611 = vld [vmem:[#allocation7 + $0x18] sm:$0xf]
        %v612 = vld [vmem:[#allocation7 + $0x1c] sm:$0xf]
        %v613 = vld [vmem:[#allocation7 + $0x20] sm:$0xf]
        %v614 = vld [vmem:[#allocation7 + $0x24] sm:$0xf]
        %v615 = vld [vmem:[#allocation7 + $0x28] sm:$0xf]
        %v616 = vld [vmem:[#allocation7 + $0x2c] sm:$0xf]
        %v617 = vld [vmem:[#allocation7 + $0x30] sm:$0xf]
        %v618 = vld [vmem:[#allocation7 + $0x34] sm:$0xf]
        %v619 = vld [vmem:[#allocation7 + $0x38] sm:$0xf]
        %v620 = vld [vmem:[#allocation7 + $0x3c] sm:$0xf]
        %v621 = vld [vmem:[#allocation7 + $0x40] sm:$0xf]
        %v622 = vld [vmem:[#allocation7 + $0x44] sm:$0xf]
        %v623 = vld [vmem:[#allocation7 + $0x48] sm:$0xf]
        %v624 = vld [vmem:[#allocation7 + $0x4c] sm:$0xf]
        %v625 = vld [vmem:[#allocation7 + $0x50] sm:$0xf]
        %v626 = vld [vmem:[#allocation7 + $0x54] sm:$0xf]
        %v627 = vld [vmem:[#allocation7 + $0x58] sm:$0xf]
        %v628 = vld [vmem:[#allocation7 + $0x5c] sm:$0xf]
        %v629 = vld [vmem:[#allocation7 + $0x60] sm:$0xf]
        %v630 = vld [vmem:[#allocation7 + $0x64] sm:$0xf]
        %v631 = vld [vmem:[#allocation7 + $0x68] sm:$0xf]
        %v632 = vld [vmem:[#allocation7 + $0x6c] sm:$0xf]
        %v633 = vld [vmem:[#allocation7 + $0x70] sm:$0xf]
        %v634 = vld [vmem:[#allocation7 + $0x74] sm:$0xf]
        %v635 = vld [vmem:[#allocation7 + $0x78] sm:$0xf]
        %v636 = vld [vmem:[#allocation7 + $0x7c] sm:$0xf]
        %v637 = vld [vmem:[#allocation7 + $0x80] sm:$0xf]
        %v638 = vld [vmem:[#allocation7 + $0x84] sm:$0xf]
        %v639 = vld [vmem:[#allocation7 + $0x88] sm:$0xf]
        %v640 = vld [vmem:[#allocation7 + $0x8c] sm:$0xf]
        %v641 = vld [vmem:[#allocation7 + $0x90] sm:$0xf]
        %v642 = vld [vmem:[#allocation7 + $0x94] sm:$0xf]
        %v643 = vld [vmem:[#allocation7 + $0x98] sm:$0xf]
        %v644 = vld [vmem:[#allocation7 + $0x9c] sm:$0xf]
        %v645 = vld [vmem:[#allocation7 + $0xa0] sm:$0xf]
        %v646 = vld [vmem:[#allocation7 + $0xa4] sm:$0xf]
        %v647 = vld [vmem:[#allocation7 + $0xa8] sm:$0xf]
        %v648 = vld [vmem:[#allocation7 + $0xac] sm:$0xf]
        %v649 = vld [vmem:[#allocation7 + $0xb0] sm:$0xf]
        %v650 = vld [vmem:[#allocation7 + $0xb4] sm:$0xf]
        %v651 = vld [vmem:[#allocation7 + $0xb8] sm:$0xf]
        %v652 = vld [vmem:[#allocation7 + $0xbc] sm:$0xf]
        %v653 = vld [vmem:[#allocation7 + $0xc0] sm:$0xf]
        %v654 = vld [vmem:[#allocation7 + $0xc4] sm:$0xf]
        %v655 = vld [vmem:[#allocation7 + $0xc8] sm:$0xf]
        %v656 = vld [vmem:[#allocation7 + $0xcc] sm:$0xf]
        %v657 = vld [vmem:[#allocation7 + $0xd0] sm:$0xf]
        %v658 = vld [vmem:[#allocation7 + $0xd4] sm:$0xf]
        %v659 = vld [vmem:[#allocation7 + $0xd8] sm:$0xf]
        %v660 = vld [vmem:[#allocation7 + $0xdc] sm:$0xf]
        %v661 = vld [vmem:[#allocation7 + $0xe0] sm:$0xf]
        %v662 = vld [vmem:[#allocation7 + $0xe4] sm:$0xf]
        %v663 = vld [vmem:[#allocation7 + $0xe8] sm:$0xf]
        %v664 = vld [vmem:[#allocation7 + $0xec] sm:$0xf]
        %v665 = vld [vmem:[#allocation7 + $0xf0] sm:$0xf]
        %v666 = vld [vmem:[#allocation7 + $0xf4] sm:$0xf]
        %v667 = vld [vmem:[#allocation7 + $0xf8] sm:$0xf]
        %v668 = vld [vmem:[#allocation7 + $0xfc] sm:$0xf]
        %v669 = vld [vmem:[%s4] sm:$0x1]
        %v671 = vlaneseq
        %v672 = vshrl.u32 %v671, 7
        %v673 = vsub.s32 0, %v672
        %v674 = vrot.slane %v669, %v673
        %v740 = vunpack.c.l.b16 %v605
        %v741 = vunpack.c.l.b16 %v606
        %v742 = vunpack.c.l.b16 %v607
        %v743 = vunpack.c.l.b16 %v608
        %v744 = vunpack.c.l.b16 %v609
        %v745 = vunpack.c.l.b16 %v610
        %v746 = vunpack.c.l.b16 %v611
        %v747 = vunpack.c.l.b16 %v612
        %v748 = vunpack.c.l.b16 %v613
        %v749 = vunpack.c.l.b16 %v614
        %v750 = vunpack.c.l.b16 %v615
        %v751 = vunpack.c.l.b16 %v616
        %v752 = vunpack.c.l.b16 %v617
        %v753 = vunpack.c.l.b16 %v618
        %v754 = vunpack.c.l.b16 %v619
        %v755 = vunpack.c.l.b16 %v620
        %v756 = vunpack.c.l.b16 %v621
        %v757 = vunpack.c.l.b16 %v622
        %v758 = vunpack.c.l.b16 %v623
        %v759 = vunpack.c.l.b16 %v624
        %v760 = vunpack.c.l.b16 %v625
        %v761 = vunpack.c.l.b16 %v626
        %v762 = vunpack.c.l.b16 %v627
        %v763 = vunpack.c.l.b16 %v628
        %v764 = vunpack.c.l.b16 %v629
        %v765 = vunpack.c.l.b16 %v630
        %v766 = vunpack.c.l.b16 %v631
        %v767 = vunpack.c.l.b16 %v632
        %v768 = vunpack.c.l.b16 %v633
        %v769 = vunpack.c.l.b16 %v634
        %v770 = vunpack.c.l.b16 %v635
        %v771 = vunpack.c.l.b16 %v636
        %v772 = vunpack.c.l.b16 %v637
        %v773 = vunpack.c.l.b16 %v638
        %v774 = vunpack.c.l.b16 %v639
        %v775 = vunpack.c.l.b16 %v640
        %v776 = vunpack.c.l.b16 %v641
        %v777 = vunpack.c.l.b16 %v642
        %v778 = vunpack.c.l.b16 %v643
        %v779 = vunpack.c.l.b16 %v644
        %v780 = vunpack.c.l.b16 %v645
        %v781 = vunpack.c.l.b16 %v646
        %v782 = vunpack.c.l.b16 %v647
        %v783 = vunpack.c.l.b16 %v648
        %v784 = vunpack.c.l.b16 %v649
        %v785 = vunpack.c.l.b16 %v650
        %v786 = vunpack.c.l.b16 %v651
        %v787 = vunpack.c.l.b16 %v652
        %v788 = vunpack.c.l.b16 %v653
        %v789 = vunpack.c.l.b16 %v654
        %v790 = vunpack.c.l.b16 %v655
        %v791 = vunpack.c.l.b16 %v656
        %v792 = vunpack.c.l.b16 %v657
        %v793 = vunpack.c.l.b16 %v658
        %v794 = vunpack.c.l.b16 %v659
        %v795 = vunpack.c.l.b16 %v660
        %v796 = vunpack.c.l.b16 %v661
        %v797 = vunpack.c.l.b16 %v662
        %v798 = vunpack.c.l.b16 %v663
        %v799 = vunpack.c.l.b16 %v664
        %v800 = vunpack.c.l.b16 %v665
        %v801 = vunpack.c.l.b16 %v666
        %v802 = vunpack.c.l.b16 %v667
        %v803 = vunpack.c.l.b16 %v668
        %v804 = vpack.c.b16 %v741, %v740
        %v805 = vpack.c.b16 %v743, %v742
        %v806 = vpack.c.b16 %v745, %v744
        %v807 = vpack.c.b16 %v747, %v746
        %v808 = vpack.c.b16 %v749, %v748
        %v809 = vpack.c.b16 %v751, %v750
        %v810 = vpack.c.b16 %v753, %v752
        %v811 = vpack.c.b16 %v755, %v754
        %v812 = vpack.c.b16 %v757, %v756
        %v813 = vpack.c.b16 %v759, %v758
        %v814 = vpack.c.b16 %v761, %v760
        %v815 = vpack.c.b16 %v763, %v762
        %v816 = vpack.c.b16 %v765, %v764
        %v817 = vpack.c.b16 %v767, %v766
        %v818 = vpack.c.b16 %v769, %v768
        %v819 = vpack.c.b16 %v771, %v770
        %v820 = vpack.c.b16 %v773, %v772
        %v821 = vpack.c.b16 %v775, %v774
        %v822 = vpack.c.b16 %v777, %v776
        %v823 = vpack.c.b16 %v779, %v778
        %v824 = vpack.c.b16 %v781, %v780
        %v825 = vpack.c.b16 %v783, %v782
        %v826 = vpack.c.b16 %v785, %v784
        %v827 = vpack.c.b16 %v787, %v786
        %v828 = vpack.c.b16 %v789, %v788
        %v829 = vpack.c.b16 %v791, %v790
        %v830 = vpack.c.b16 %v793, %v792
        %v831 = vpack.c.b16 %v795, %v794
        %v832 = vpack.c.b16 %v797, %v796
        %v833 = vpack.c.b16 %v799, %v798
        %v834 = vpack.c.b16 %v801, %v800
        %v835 = vpack.c.b16 %v803, %v802
        %868 = vmatprep.subr.bf16.mxu0 0
        %869 = vmatpush1.bf16.msra.mxu0 %v811
        %870 = vmatprep.subr.bf16.mxu0 0
        %871 = vmatpush1.bf16.msra.mxu0 %v810
        %872 = vmatprep.subr.bf16.mxu0 0
        %873 = vmatpush1.bf16.msra.mxu0 %v809
        %874 = vmatprep.subr.bf16.mxu0 0
        %875 = vmatpush1.bf16.msra.mxu0 %v808
        %876 = vmatprep.subr.bf16.mxu0 0
        %877 = vmatpush1.bf16.msra.mxu0 %v807
        %878 = vmatprep.subr.bf16.mxu0 0
        %879 = vmatpush1.bf16.msra.mxu0 %v806
        %880 = vmatprep.subr.bf16.mxu0 0
        %881 = vmatpush1.bf16.msra.mxu0 %v805
        %882 = vmatprep.subr.bf16.mxu0 0
        %883 = vmatpush1.bf16.msra.mxu0 %v804
        %884 = vmatprep.subr.bf16.mxu0 0
        %885 = vmatpush2.bf16.msra.mxu0 %v819
        %886 = vmatprep.subr.bf16.mxu0 0
        %887 = vmatpush2.bf16.msra.mxu0 %v818
        %888 = vmatprep.subr.bf16.mxu0 0
        %889 = vmatpush2.bf16.msra.mxu0 %v817
        %890 = vmatprep.subr.bf16.mxu0 0
        %891 = vmatpush2.bf16.msra.mxu0 %v816
        %892 = vmatprep.subr.bf16.mxu0 0
        %893 = vmatpush2.bf16.msra.mxu0 %v815
        %894 = vmatprep.subr.bf16.mxu0 0
        %895 = vmatpush2.bf16.msra.mxu0 %v814
        %896 = vmatprep.subr.bf16.mxu0 0
        %897 = vmatpush2.bf16.msra.mxu0 %v813
        %898 = vmatprep.subr.bf16.mxu0 0
        %899 = vmatpush2.bf16.msra.mxu0 %v812
        %900 = vmatprep.mubr.bf16.mxu0 %v604
        %901 = vmatmul.mubr.bf16.gmra.mxu0 %v596
        %v902 = vpop.f32.mrf.mxu0
        %v903 = vadd.f32 %v674, %v902
        %v904 = vpop.f32.mrf.mxu0
        %v905 = vpop.f32.mrf.mxu0
        %v906 = vadd.f32 %v674, %v905
        %v907 = vpop.f32.mrf.mxu0
        %908 = vdwg.mxu0
        %909 = vmatprep.subr.bf16.mxu0 0
        %910 = vmatpush1.bf16.msra.mxu0 %v827
        %911 = vmatprep.subr.bf16.mxu0 0
        %912 = vmatpush1.bf16.msra.mxu0 %v826
        %913 = vmatprep.subr.bf16.mxu0 0
        %914 = vmatpush1.bf16.msra.mxu0 %v825
        %915 = vmatprep.subr.bf16.mxu0 0
        %916 = vmatpush1.bf16.msra.mxu0 %v824
        %917 = vmatprep.subr.bf16.mxu0 0
        %918 = vmatpush1.bf16.msra.mxu0 %v823
        %919 = vmatprep.subr.bf16.mxu0 0
        %920 = vmatpush1.bf16.msra.mxu0 %v822
        %921 = vmatprep.subr.bf16.mxu0 0
        %922 = vmatpush1.bf16.msra.mxu0 %v821
        %923 = vmatprep.subr.bf16.mxu0 0
        %924 = vmatpush1.bf16.msra.mxu0 %v820
        %925 = vmatprep.subr.bf16.mxu0 0
        %926 = vmatpush2.bf16.msra.mxu0 %v835
        %927 = vmatprep.subr.bf16.mxu0 0
        %928 = vmatpush2.bf16.msra.mxu0 %v834
        %929 = vmatprep.subr.bf16.mxu0 0
        %930 = vmatpush2.bf16.msra.mxu0 %v833
        %931 = vmatprep.subr.bf16.mxu0 0
        %932 = vmatpush2.bf16.msra.mxu0 %v832
        %933 = vmatprep.subr.bf16.mxu0 0
        %934 = vmatpush2.bf16.msra.mxu0 %v831
        %935 = vmatprep.subr.bf16.mxu0 0
        %936 = vmatpush2.bf16.msra.mxu0 %v830
        %937 = vmatprep.subr.bf16.mxu0 0
        %938 = vmatpush2.bf16.msra.mxu0 %v829
        %939 = vmatprep.subr.bf16.mxu0 0
        %940 = vmatpush2.bf16.msra.mxu0 %v828
        %941 = vmatprep.mubr.bf16.mxu0 %v282
        %942 = vmatmul.mubr.bf16.gmra.mxu0 %v603
        %v943 = vpop.f32.mrf.mxu0
        %v944 = vadd.f32 %v903, %v943
        %v945 = vpop.f32.mrf.mxu0
        %v946 = vpop.f32.mrf.mxu0
        %v947 = vadd.f32 %v906, %v946
        %v948 = vpop.f32.mrf.mxu0
        %949 = vdwg.mxu0
        %v950 = vmax.f32 %v944, 0.0
        %v951 = vmax.f32 %v947, 0.0
        %952 = vst [vmem:[%s271] sm:$0xff] %v950
        %953 = vst [vmem:[%s271 + $0x8] sm:$0xff] %v951
        %s954 = sand.u32 %s141, 1
        %s955 = scalar_lea.sflag [#allocation4], %s954
        %s956 = sand.u32 %s141, 1
        %s957 = smul.addr %s956, 16
        %s958 = scalar_lea.vmem [#allocation8], %s957
        // Predicated region
        $region53: #{tpu_custom_call.1} parent=39 // pred_check
          %p959 = pneg %p151
        $region54: #{tpu_custom_call.1} parent=39 // pred_check_branch
          %961 = sbr.rel (%p959) target = $region56
        $region55: #{tpu_custom_call.1} parent=39 // pred_region
          %s963 = ssub.s32 256, 256
          %964 = vsyncadd %s955, %s963
          %s965 = smul.addr %s23, 2
          %s966 = smul.addr %s965, 128
          %s967 = scalar_lea.hbm %s5, %s966
          %s968 = sshll.u32 %s958, 4
          %s969 = int_to_ptr.vmem [resolvable:$true] %s968
          %974 = dma.vmem_to_hbm [thread:$0]  %s969, 256, %s967, %s955, 128, 128, 8
        $region56: #{tpu_custom_call.1} parent=39 // pred_fallthru
          _
      $region40: #{tpu_custom_call.1} parent=5 // pred_fallthru
        _
      %p975 = scmp.le.s32.totalorder 2, %s18
      // Predicated region
      $region57: #{tpu_custom_call.1} parent=5 // pred_check
        %p976 = pneg %p975
      $region58: #{tpu_custom_call.1} parent=5 // pred_check_branch
        %978 = sbr.rel (%p976) target = $region60
      $region59: #{tpu_custom_call.1} parent=5 // pred_region
        %s979 = ssub.s32 %s18, 2
        // Predicated region
        $region61: #{tpu_custom_call.1} parent=59 // pred_check
          %p980 = pneg %p157
        $region62: #{tpu_custom_call.1} parent=59 // pred_check_branch
          %982 = sbr.rel (%p980) target = $region64
        $region63: #{tpu_custom_call.1} parent=59 // pred_region
          %s983 = sand.u32 %s142, 1
          %s984 = scalar_lea.sflag [#allocation4], %s983
          %s985 = sand.u32 %s142, 1
          %s986 = smul.addr %s985, 16
          %s987 = scalar_lea.vmem [#allocation8], %s986
          %988 = dma.done %s984, 256
        $region64: #{tpu_custom_call.1} parent=59 // pred_fallthru
          _
      $region60: #{tpu_custom_call.1} parent=5 // pred_fallthru
        _
    $region6: #{tpu_custom_call.1} parent=1 // loop_footer
      %s22 = sadd.s32 1, %s18
    $region7: #{tpu_custom_call.1} parent=1 // loop_footer_branch
      %17 = sbr.rel target = $region3
    $region8: #{tpu_custom_call.1} parent=1 // loop_exit
      _
    %989 = vsyncpa [#allocation3], 1
    %s990 = scalar_lea.sflag [#allocation3], 1
    %991 = vsyncpa %s990, 1
    %992 = vsyncpa [#allocation6], 1
    %993 = vsyncpa [#allocation4], 1
    %s994 = scalar_lea.sflag [#allocation4], 1
    %995 = vsyncpa %s994, 1

</llo_original>
